<compile_context>
chip_gen: v7x
topology: tpu7x:2x2x1
jax: 0.10.0
libtpu: 0.0.40
codegen_flags: <defaults>
</compile_context>

<pallas_src>
import functools
import math

import jax
import jax.numpy as jnp
from jax.experimental import pallas as pl
from jax.experimental.pallas import tpu as pltpu

_MXU_DTYPE = jnp.bfloat16          # MXU operand dtype; accumulation stays f32
_LN_EPS = 1e-5                     # nn.LayerNorm default
_TM_TARGET = 256                   # row-tile target for channel-last matmul kernels
_MASK_NEG = -1e9                   # additive mask value (matches demo mask)
_VMEM_LIMIT = 32 * 1024 * 1024     # raise v5e's 16 MiB scoped default; safe on v6e/v7x
                                   # (sweep higher on v5e/v6e at large E)


# ----------------------------------------------------------------------------
# Exact (erf-based) GELU, matching torch.nn.GELU() (approximate='none').
# A&S 7.1.26 rational approximation (~1.5e-7 abs error ~= f32 precision).
# Kept (known-good lowering, parity-preserving); swap to tanh-GELU only if the
# MLP kernel shows VALU saturation and exact parity is not required.
# ----------------------------------------------------------------------------
_A1, _A2, _A3, _A4, _A5, _P = (0.254829592, -0.284496736, 1.421413741,
                               -1.453152027, 1.061405429, 0.3275911)


def _erf(x):
    s = jnp.sign(x)
    ax = jnp.abs(x)
    t = 1.0 / (1.0 + _P * ax)
    poly = ((((_A5 * t + _A4) * t + _A3) * t + _A2) * t + _A1) * t
    return s * (1.0 - poly * jnp.exp(-ax * ax))


def _gelu_exact(x):
    return 0.5 * x * (1.0 + _erf(x * 0.7071067811865476))


def _layernorm(x, gamma, beta):
    mu = jnp.mean(x, axis=-1, keepdims=True)
    xc = x - mu
    var = jnp.mean(xc * xc, axis=-1, keepdims=True)
    return xc * jax.lax.rsqrt(var + _LN_EPS) * gamma + beta


def _mxu(a):
    # Cast an activation at the MXU boundary; weights are already stored bf16.
    return a if a.dtype == _MXU_DTYPE else a.astype(_MXU_DTYPE)


# ----------------------------------------------------------------------------
# Pallas kernels
# ----------------------------------------------------------------------------
def _add_ln_qkv_kernel(h_ref, p_ref, g_ref, b_ref, w_ref, wb_ref,
                       xn_ref, qkv_ref):
    # x_in = h + pos ; xn = ln_1(x_in) ; qkv = xn @ Wqkv + bqkv
    # (1/sqrt(Dh) is pre-folded into the Q columns of Wqkv / bqkv.)
    xn = _layernorm(h_ref[...] + p_ref[...], g_ref[...], b_ref[...])
    xn_ref[...] = xn                      # residual base (module uses x = ln1(x))
    qkv = jnp.dot(_mxu(xn), w_ref[...],
                  preferred_element_type=jnp.float32) + wb_ref[...]
    qkv_ref[...] = qkv.astype(qkv_ref.dtype)


def _attn_body(qkv_ref, o_ref, mask_add, *, num_heads, head_dim, q_tile):
    # qkv_ref: [L, 3E] bf16 (one batch, all heads); o_ref: [TQ, E] bf16.
    # mask_add: [TQ, L] additive f32 mask (loaded or generated by the caller).
    E = num_heads * head_dim
    q0 = pl.multiple_of(pl.program_id(1) * q_tile, q_tile)
    dn = (((1,), (1,)), ((), ()))          # contract Dh of both operands (no .T)
    for h in range(num_heads):             # static unroll; single kernel launch
        lo = h * head_dim
        q = qkv_ref[pl.ds(q0, q_tile), lo:lo + head_dim]            # [TQ, Dh]
        k = qkv_ref[:, E + lo:E + lo + head_dim]                    # [L,  Dh]
        v = qkv_ref[:, 2 * E + lo:2 * E + lo + head_dim]            # [L,  Dh]
        s = jax.lax.dot_general(q, k, dn, preferred_element_type=jnp.float32)
        s = s + mask_add
        s = s - jnp.max(s, axis=-1, keepdims=True)
        p = jnp.exp(s)
        # approx reciprocal (EUP slot, ~free); ~1e-4-class rel. error vs exact div.
        p = p * pl.reciprocal(jnp.sum(p, axis=-1, keepdims=True), approx=True)
        o = jnp.dot(p.astype(qkv_ref.dtype), v, preferred_element_type=jnp.float32)
        o_ref[:, lo:lo + head_dim] = o.astype(o_ref.dtype)
    # TODO(synk): for Dh >= 128, lay qkv out with 128-aligned per-head columns so
    #             the per-head slices above are lane-aligned (no relayout).


def _attn_kernel_causal(qkv_ref, o_ref, *, num_heads, head_dim, q_tile, seq_len):
    # Causal mask generated in-kernel (no [L,L] HBM read / VMEM residency).
    q0 = pl.program_id(1) * q_tile
    rows = q0 + jax.lax.broadcasted_iota(jnp.int32, (q_tile, seq_len), 0)
    cols = jax.lax.broadcasted_iota(jnp.int32, (q_tile, seq_len), 1)
    mask_add = jnp.where(rows >= cols, 0.0, _MASK_NEG).astype(jnp.float32)
    _attn_body(qkv_ref, o_ref, mask_add,
               num_heads=num_heads, head_dim=head_dim, q_tile=q_tile)


def _attn_kernel_masked(qkv_ref, mask_ref, o_ref, *, num_heads, head_dim, q_tile):
    # Explicit additive [TQ, L] mask block (module signature path).
    _attn_body(qkv_ref, o_ref, mask_ref[...].astype(jnp.float32),
               num_heads=num_heads, head_dim=head_dim, q_tile=q_tile)


def _attnout_mlpin_kernel(o_ref, wo_ref, bo_ref, xn_ref, g2_ref, b2_ref,
                          w1_ref, b1_ref, x_ref, h1_ref):
    # x = xn + attn_out @ Wo + bo ; h1 = gelu(ln_2(x) @ W1 + b1)
    x = (xn_ref[...]
         + jnp.dot(o_ref[...], wo_ref[...], preferred_element_type=jnp.float32)
         + bo_ref[...])
    x_ref[...] = x                         # residual stream stays f32
    x2n = _layernorm(x, g2_ref[...], b2_ref[...])
    h1 = jnp.dot(_mxu(x2n), w1_ref[...],
                 preferred_element_type=jnp.float32) + b1_ref[...]
    h1_ref[...] = _gelu_exact(h1).astype(h1_ref.dtype)


def _linear_residual_kernel(x_ref, w_ref, b_ref, r_ref, o_ref):
    # out = residual + x @ W + b   (residual add fused into the matmul epilogue)
    o_ref[...] = (r_ref[...]
                  + jnp.dot(_mxu(x_ref[...]), w_ref[...],
                            preferred_element_type=jnp.float32)
                  + b_ref[...])


def _ln_linear_kernel(x_ref, g_ref, b_ref, w_ref, wb_ref, o_ref):
    # out = ln(x) @ W + b
    xn = _layernorm(x_ref[...], g_ref[...], b_ref[...])
    o_ref[...] = jnp.dot(_mxu(xn), w_ref[...],
                         preferred_element_type=jnp.float32) + wb_ref[...]


# ----------------------------------------------------------------------------
# Pallas wrappers (row-tiled over M = B*L, weights resident per step)
# TODO(synk): add N/K tiling for the weight blocks at E >= 2048 (v7x 64 MiB VMEM).
# ----------------------------------------------------------------------------
def _row_tile(M):
    # Multiples of 16 (bf16 sublane packing); prefer >= 2 grid steps (megacore).
    if M <= 16:
        return M
    tm = min(_TM_TARGET, M)
    if tm == M and M % 32 == 0:
        tm = M // 2
    return tm


def _q_tile(L):
    if L <= 256:
        return L
    for t in (256, 128, 64, 32, 16):
        if L % t == 0:
            return t
    return L   # TODO(synk): ragged L -> pad or switch to flash-style tiling


def _row_params():
    return pltpu.CompilerParams(dimension_semantics=("parallel",),
                                vmem_limit_bytes=_VMEM_LIMIT)


def fused_add_ln_qkv(h2, pos2, gamma, beta, W, Wb):
    M, E = h2.shape
    E3 = W.shape[1]
    TM = _row_tile(M)
    return pl.pallas_call(
        _add_ln_qkv_kernel,
        out_shape=(jax.ShapeDtypeStruct((M, E), jnp.float32),     # xn (residual)
                   jax.ShapeDtypeStruct((M, E3), _MXU_DTYPE)),    # qkv (bf16)
        grid=(pl.cdiv(M, TM),),
        in_specs=[pl.BlockSpec((TM, E), lambda i: (i, 0)),
                  pl.BlockSpec((TM, E), lambda i: (i, 0)),
                  pl.BlockSpec((1, E), lambda i: (0, 0)),
                  pl.BlockSpec((1, E), lambda i: (0, 0)),
                  pl.BlockSpec((E, E3), lambda i: (0, 0)),
                  pl.BlockSpec((1, E3), lambda i: (0, 0))],
        out_specs=(pl.BlockSpec((TM, E), lambda i: (i, 0)),
                   pl.BlockSpec((TM, E3), lambda i: (i, 0))),
        compiler_params=_row_params(),
    )(h2, pos2, gamma, beta, W, Wb)


def attention(qkv2, attn_mask, B, L, num_heads):
    M, E3 = qkv2.shape
    E = E3 // 3
    Dh = E // num_heads
    TQ = _q_tile(L)
    qkv3 = qkv2.reshape(B, L, E3)        # free view: rows already (b, l)-ordered
    # qkv block is full per-batch and constant across the q-tile axis, so Pallas
    # only re-DMAs it when b changes; the q-tile axis bounds score size to [TQ,L].
    qkv_spec = pl.BlockSpec((None, L, E3), lambda b, qi: (b, 0, 0))
    o_spec = pl.BlockSpec((None, TQ, E), lambda b, qi: (b, qi, 0))
    if attn_mask is None:
        kern = functools.partial(_attn_kernel_causal, num_heads=num_heads,
                                 head_dim=Dh, q_tile=TQ, seq_len=L)
        in_specs = [qkv_spec]
        args = (qkv3,)
    else:
        kern = functools.partial(_attn_kernel_masked, num_heads=num_heads,
                                 head_dim=Dh, q_tile=TQ)
        in_specs = [qkv_spec, pl.BlockSpec((TQ, L), lambda b, qi: (qi, 0))]
        args = (qkv3, attn_mask)
    o = pl.pallas_call(
        kern,
        out_shape=jax.ShapeDtypeStruct((B, L, E), _MXU_DTYPE),
        grid=(B, pl.cdiv(L, TQ)),
        in_specs=in_specs,
        out_specs=o_spec,
        compiler_params=pltpu.CompilerParams(
            dimension_semantics=("parallel", "parallel"),
            vmem_limit_bytes=_VMEM_LIMIT),
    )(*args)
    return o.reshape(M, E)


def attn_out_mlp_in(o2, Wo, bo, xn, g2, b2, W1, b1):
    # x = xn + o2 @ Wo + bo ; h1 = gelu(ln_2(x) @ W1 + b1)  (one kernel, two outs)
    M, E = xn.shape
    H1 = W1.shape[1]
    TM = _row_tile(M)
    return pl.pallas_call(
        _attnout_mlpin_kernel,
        out_shape=(jax.ShapeDtypeStruct((M, E), jnp.float32),     # x (residual)
                   jax.ShapeDtypeStruct((M, H1), _MXU_DTYPE)),    # MLP hidden
        grid=(pl.cdiv(M, TM),),
        in_specs=[pl.BlockSpec((TM, E), lambda i: (i, 0)),
                  pl.BlockSpec((E, E), lambda i: (0, 0)),
                  pl.BlockSpec((1, E), lambda i: (0, 0)),
                  pl.BlockSpec((TM, E), lambda i: (i, 0)),
                  pl.BlockSpec((1, E), lambda i: (0, 0)),
                  pl.BlockSpec((1, E), lambda i: (0, 0)),
                  pl.BlockSpec((E, H1), lambda i: (0, 0)),
                  pl.BlockSpec((1, H1), lambda i: (0, 0))],
        out_specs=(pl.BlockSpec((TM, E), lambda i: (i, 0)),
                   pl.BlockSpec((TM, H1), lambda i: (i, 0))),
        compiler_params=_row_params(),
    )(o2, Wo, bo, xn, g2, b2, W1, b1)


def linear_residual(x2, W, Wb, resid):
    M, Ein = x2.shape
    Eout = W.shape[1]
    TM = _row_tile(M)
    return pl.pallas_call(
        _linear_residual_kernel,
        out_shape=jax.ShapeDtypeStruct((M, Eout), jnp.float32),
        grid=(pl.cdiv(M, TM),),
        in_specs=[pl.BlockSpec((TM, Ein), lambda i: (i, 0)),
                  pl.BlockSpec((Ein, Eout), lambda i: (0, 0)),
                  pl.BlockSpec((1, Eout), lambda i: (0, 0)),
                  pl.BlockSpec((TM, Eout), lambda i: (i, 0))],
        out_specs=pl.BlockSpec((TM, Eout), lambda i: (i, 0)),
        compiler_params=_row_params(),
    )(x2, W, Wb, resid)


def ln_linear(x2, gamma, beta, W, Wb):
    M, Ein = x2.shape
    Eout = W.shape[1]
    TM = _row_tile(M)
    return pl.pallas_call(
        _ln_linear_kernel,
        out_shape=jax.ShapeDtypeStruct((M, Eout), jnp.float32),
        grid=(pl.cdiv(M, TM),),
        in_specs=[pl.BlockSpec((TM, Ein), lambda i: (i, 0)),
                  pl.BlockSpec((1, Ein), lambda i: (0, 0)),
                  pl.BlockSpec((1, Ein), lambda i: (0, 0)),
                  pl.BlockSpec((Ein, Eout), lambda i: (0, 0)),
                  pl.BlockSpec((1, Eout), lambda i: (0, 0))],
        out_specs=pl.BlockSpec((TM, Eout), lambda i: (i, 0)),
        compiler_params=_row_params(),
    )(x2, gamma, beta, W, Wb)


# ----------------------------------------------------------------------------
# Model forward (glue in plain JAX = only free reshapes; all math in Pallas)
# ----------------------------------------------------------------------------
def block_forward(x2, pos2, p, mask, B, L, num_heads):
    # Matches Block.forward: x = ln_1(x); x = x + attn(x,x,x); x = x + mlp(ln_2(x))
    xn, qkv = fused_add_ln_qkv(x2, pos2, p["ln1_g"], p["ln1_b"],
                               p["Wqkv"], p["bqkv"])
    o = attention(qkv, mask, B, L, num_heads)
    x, h1 = attn_out_mlp_in(o, p["Wo"], p["bo"], xn,
                            p["ln2_g"], p["ln2_b"], p["W1"], p["b1"])
    return linear_residual(h1, p["W2"], p["b2"], x)           # x + mlp(ln_2(x))


def gpt_generator_forward(h, pos, attn_mask, params, num_heads, group_size):
    # h, pos: [batch, length, C]; attn_mask: None (causal, generated in-kernel)
    # or an [length, length] additive float mask (module signature).
    B, L, C = h.shape
    x2 = h.reshape(B * L, C)       # (b, l)-row-major, channel-last
    pos2 = pos.reshape(B * L, C)
    for lp in params["layers"]:
        x2 = block_forward(x2, pos2, lp, attn_mask, B, L, num_heads)
    # ln_f + Conv1d(kernel_size=1) == per-position channel linear. The kernel
    # output is lane-padded to a multiple of 128 (unmasked stores); slice here.
    rp = ln_linear(x2, params["lnf_g"], params["lnf_b"],
                   params["Wc_pad"], params["bc_pad"])
    rp = rp[:, :3 * group_size]
    return rp.reshape(B * L, group_size, 3)


# ----------------------------------------------------------------------------
# Parameters: reference-style f32 init + kernel-ready prep (bf16 weights, folded
# Q-scale, lane-padded final conv weight).
# ----------------------------------------------------------------------------
def init_params(key, E, num_layers, trans_dim, G):
    def nrm(k, shape, scale=0.02):
        return scale * jax.random.normal(k, shape, dtype=jnp.float32)

    layers = []
    for l in range(num_layers):
        ks = jax.random.split(jax.random.fold_in(key, l), 4)
        layers.append(dict(
            ln1_g=jnp.ones((1, E), jnp.float32), ln1_b=jnp.zeros((1, E), jnp.float32),
            ln2_g=jnp.ones((1, E), jnp.float32), ln2_b=jnp.zeros((1, E), jnp.float32),
            Wqkv=nrm(ks[0], (E, 3 * E)), bqkv=jnp.zeros((1, 3 * E), jnp.float32),
            Wo=nrm(ks[1], (E, E)), bo=jnp.zeros((1, E), jnp.float32),
            W1=nrm(ks[2], (E, 4 * E)), b1=jnp.zeros((1, 4 * E), jnp.float32),
            W2=nrm(ks[3], (4 * E, E)), b2=jnp.zeros((1, E), jnp.float32),
        ))
    params = dict(
        layers=layers,
        lnf_g=jnp.ones((1, E), jnp.float32),
        lnf_b=jnp.zeros((1, E), jnp.float32),
        Wc=nrm(jax.random.fold_in(key, 1000), (trans_dim, 3 * G)),
        bc=jnp.zeros((1, 3 * G), jnp.float32),
        # sos is unused in forward but exists in the module; keep for shape parity.
        sos=jax.random.normal(jax.random.fold_in(key, 2000), (E,), jnp.float32),
    )
    return params


def prepare_params(params, E, num_heads, group_size):
    Dh = E // num_heads
    scale = 1.0 / math.sqrt(Dh)
    # Fold 1/sqrt(Dh) into the Q columns of Wqkv (+ bqkv); qkv only feeds attention.
    col_scale = jnp.concatenate([jnp.full((E,), scale, jnp.float32),
                                 jnp.ones((2 * E,), jnp.float32)])
    out = dict(params)
    layers = []
    for p in params["layers"]:
        lp = dict(p)
        lp["Wqkv"] = (p["Wqkv"] * col_scale).astype(_MXU_DTYPE)
        lp["bqkv"] = p["bqkv"] * col_scale
        lp["Wo"] = p["Wo"].astype(_MXU_DTYPE)
        lp["W1"] = p["W1"].astype(_MXU_DTYPE)
        lp["W2"] = p["W2"].astype(_MXU_DTYPE)
        layers.append(lp)
    out["layers"] = layers
    n_out = 3 * group_size
    n_pad = ((n_out + 127) // 128) * 128
    Wc_pad = jnp.zeros((params["Wc"].shape[0], n_pad), jnp.float32)
    out["Wc_pad"] = Wc_pad.at[:, :n_out].set(params["Wc"]).astype(_MXU_DTYPE)
    out["bc_pad"] = jnp.zeros((1, n_pad), jnp.float32).at[:, :n_out].set(params["bc"])
    return out


if __name__ == "__main__":
    embed_dim, num_heads, num_layers = 32, 4, 2
    trans_dim, group_size = 32, 4    # trans_dim == embed_dim (as in the module's use)
    batch, length = 2, 16

    key = jax.random.PRNGKey(0)
    raw_params = init_params(key, embed_dim, num_layers, trans_dim, group_size)
    params = prepare_params(raw_params, embed_dim, num_heads, group_size)

    kh, kp = jax.random.split(jax.random.fold_in(key, 42))
    h = jax.random.normal(kh, (batch, length, embed_dim), dtype=jnp.float32)
    pos = jax.random.normal(kp, (batch, length, embed_dim), dtype=jnp.float32)

    # Path 1: causal mask generated in-kernel (no [L, L] HBM read).
    out_causal = gpt_generator_forward(h, pos, None, params, num_heads, group_size)
    out_causal = jax.block_until_ready(out_causal)

    # Path 2: explicit additive [L, L] attn_mask (module signature), same pattern.
    attn_mask = jnp.where(jnp.tril(jnp.ones((length, length), dtype=bool)),
                          0.0, _MASK_NEG).astype(jnp.float32)
    out_masked = gpt_generator_forward(h, pos, attn_mask, params, num_heads,
                                       group_size)
    out_masked = jax.block_until_ready(out_masked)

    assert out_causal.shape == (batch * length, group_size, 3), out_causal.shape
    assert bool(jnp.all(jnp.isfinite(out_causal)))
    assert bool(jnp.allclose(out_causal, out_masked, atol=1e-5, rtol=1e-5))
    print("KERNEL_OK")
</pallas_src>

<mosaic_0001>
module attributes {stable_mosaic.version = 11 : i64} {
  func.func @_add_ln_qkv_kernel(%arg0: i32, %arg1: memref<16x32xf32, #tpu.memory_space<vmem>>, %arg2: memref<16x32xf32, #tpu.memory_space<vmem>>, %arg3: memref<1x32xf32, #tpu.memory_space<vmem>>, %arg4: memref<1x32xf32, #tpu.memory_space<vmem>>, %arg5: memref<32x96xbf16, #tpu.memory_space<vmem>>, %arg6: memref<1x96xf32, #tpu.memory_space<vmem>>, %arg7: memref<16x32xf32, #tpu.memory_space<vmem>>, %arg8: memref<16x96xbf16, #tpu.memory_space<vmem>>) attributes {dimension_semantics = [#tpu.dimension_semantics<parallel>], iteration_bounds = array<i64: 2>, scalar_prefetch = 0 : i64, scratch_operands = 0 : i64, tpu.core_type = #tpu.core_type<tc>, window_params = [{transform_indices = @transform_0, window_bounds = array<i64: 16, 32>}, {transform_indices = @transform_1, window_bounds = array<i64: 16, 32>}, {pipeline_mode = #tpu.pipeline_mode<synchronous>, transform_indices = @transform_2, window_bounds = array<i64: 1, 32>}, {pipeline_mode = #tpu.pipeline_mode<synchronous>, transform_indices = @transform_3, window_bounds = array<i64: 1, 32>}, {pipeline_mode = #tpu.pipeline_mode<synchronous>, transform_indices = @transform_4, window_bounds = array<i64: 32, 96>}, {pipeline_mode = #tpu.pipeline_mode<synchronous>, transform_indices = @transform_5, window_bounds = array<i64: 1, 96>}, {transform_indices = @transform_6, window_bounds = array<i64: 16, 32>}, {transform_indices = @transform_7, window_bounds = array<i64: 16, 96>}]} {
    %c0 = arith.constant 0 : index
    %c0_0 = arith.constant 0 : index
    %0 = vector.load %arg1[%c0, %c0_0] : memref<16x32xf32, #tpu.memory_space<vmem>>, vector<16x32xf32>
    %c0_1 = arith.constant 0 : index
    %c0_2 = arith.constant 0 : index
    %1 = vector.load %arg2[%c0_1, %c0_2] : memref<16x32xf32, #tpu.memory_space<vmem>>, vector<16x32xf32>
    %2 = arith.addf %0, %1 : vector<16x32xf32>
    %c0_3 = arith.constant 0 : index
    %c0_4 = arith.constant 0 : index
    %3 = vector.load %arg3[%c0_3, %c0_4] : memref<1x32xf32, #tpu.memory_space<vmem>>, vector<1x32xf32>
    %c0_5 = arith.constant 0 : index
    %c0_6 = arith.constant 0 : index
    %4 = vector.load %arg4[%c0_5, %c0_6] : memref<1x32xf32, #tpu.memory_space<vmem>>, vector<1x32xf32>
    %cst = arith.constant dense<0.000000e+00> : vector<16xf32>
    %5 = vector.multi_reduction <add>, %2, %cst [1] : vector<16x32xf32> to vector<16xf32>
    %6 = vector.shape_cast %5 : vector<16xf32> to vector<16x1xf32>
    %cst_7 = arith.constant 3.200000e+01 : f32
    %7 = vector.broadcast %cst_7 : f32 to vector<16x1xf32>
    %8 = arith.divf %6, %7 : vector<16x1xf32>
    %9 = vector.broadcast %8 : vector<16x1xf32> to vector<16x32xf32>
    %10 = arith.subf %2, %9 : vector<16x32xf32>
    %11 = arith.mulf %10, %10 : vector<16x32xf32>
    %cst_8 = arith.constant dense<0.000000e+00> : vector<16xf32>
    %12 = vector.multi_reduction <add>, %11, %cst_8 [1] : vector<16x32xf32> to vector<16xf32>
    %13 = vector.shape_cast %12 : vector<16xf32> to vector<16x1xf32>
    %cst_9 = arith.constant 3.200000e+01 : f32
    %14 = vector.broadcast %cst_9 : f32 to vector<16x1xf32>
    %15 = arith.divf %13, %14 : vector<16x1xf32>
    %cst_10 = arith.constant 9.99999974E-6 : f32
    %16 = vector.broadcast %cst_10 : f32 to vector<16x1xf32>
    %17 = arith.addf %15, %16 : vector<16x1xf32>
    %18 = math.rsqrt %17 : vector<16x1xf32>
    %19 = vector.broadcast %18 : vector<16x1xf32> to vector<16x32xf32>
    %20 = arith.mulf %10, %19 : vector<16x32xf32>
    %21 = vector.broadcast %3 : vector<1x32xf32> to vector<16x32xf32>
    %22 = arith.mulf %20, %21 : vector<16x32xf32>
    %23 = vector.broadcast %4 : vector<1x32xf32> to vector<16x32xf32>
    %24 = arith.addf %22, %23 : vector<16x32xf32>
    %c0_11 = arith.constant 0 : index
    %c0_12 = arith.constant 0 : index
    %25 = vector.load %arg7[%c0_11, %c0_12] : memref<16x32xf32, #tpu.memory_space<vmem>>, vector<16x32xf32>
    tpu.vector_store %arg7[%c0_11, %c0_12], %24 {strides = array<i32>} : memref<16x32xf32, #tpu.memory_space<vmem>>, vector<16x32xf32>,
    %26 = arith.truncf %24 : vector<16x32xf32> to vector<16x32xbf16>
    %c0_13 = arith.constant 0 : index
    %c0_14 = arith.constant 0 : index
    %27 = vector.load %arg5[%c0_13, %c0_14] : memref<32x96xbf16, #tpu.memory_space<vmem>>, vector<32x96xbf16>
    %cst_15 = arith.constant dense<0.000000e+00> : vector<16x96xf32>
    %28 = tpu.matmul %26, %27, %cst_15 {dimension_numbers = #tpu.dot_dimension_numbers<[1], [0], [0], [1], [0, 0, 1, 1], [], []>} : vector<16x32xbf16>, vector<32x96xbf16>, vector<16x96xf32> -> vector<16x96xf32>
    %c0_16 = arith.constant 0 : index
    %c0_17 = arith.constant 0 : index
    %29 = vector.load %arg6[%c0_16, %c0_17] : memref<1x96xf32, #tpu.memory_space<vmem>>, vector<1x96xf32>
    %30 = vector.broadcast %29 : vector<1x96xf32> to vector<16x96xf32>
    %31 = arith.addf %28, %30 : vector<16x96xf32>
    %32 = arith.truncf %31 : vector<16x96xf32> to vector<16x96xbf16>
    %c0_18 = arith.constant 0 : index
    %c0_19 = arith.constant 0 : index
    %33 = vector.load %arg8[%c0_18, %c0_19] : memref<16x96xbf16, #tpu.memory_space<vmem>>, vector<16x96xbf16>
    tpu.vector_store %arg8[%c0_18, %c0_19], %32 {strides = array<i32>} : memref<16x96xbf16, #tpu.memory_space<vmem>>, vector<16x96xbf16>,
    return
  }
  func.func @transform_0(%arg0: i32) -> (i32, i32) {
    %c0_i32 = arith.constant 0 : i32
    %c0_i32_0 = arith.constant 0 : i32
    return %arg0, %c0_i32 : i32, i32
  }
  func.func @transform_1(%arg0: i32) -> (i32, i32) {
    %c0_i32 = arith.constant 0 : i32
    %c0_i32_0 = arith.constant 0 : i32
    return %arg0, %c0_i32 : i32, i32
  }
  func.func @transform_2(%arg0: i32) -> (i32, i32) {
    %c0_i32 = arith.constant 0 : i32
    %c0_i32_0 = arith.constant 0 : i32
    %c0_i32_1 = arith.constant 0 : i32
    return %c0_i32, %c0_i32_0 : i32, i32
  }
  func.func @transform_3(%arg0: i32) -> (i32, i32) {
    %c0_i32 = arith.constant 0 : i32
    %c0_i32_0 = arith.constant 0 : i32
    %c0_i32_1 = arith.constant 0 : i32
    return %c0_i32, %c0_i32_0 : i32, i32
  }
  func.func @transform_4(%arg0: i32) -> (i32, i32) {
    %c0_i32 = arith.constant 0 : i32
    %c0_i32_0 = arith.constant 0 : i32
    %c0_i32_1 = arith.constant 0 : i32
    return %c0_i32, %c0_i32_0 : i32, i32
  }
  func.func @transform_5(%arg0: i32) -> (i32, i32) {
    %c0_i32 = arith.constant 0 : i32
    %c0_i32_0 = arith.constant 0 : i32
    %c0_i32_1 = arith.constant 0 : i32
    return %c0_i32, %c0_i32_0 : i32, i32
  }
  func.func @transform_6(%arg0: i32) -> (i32, i32) {
    %c0_i32 = arith.constant 0 : i32
    %c0_i32_0 = arith.constant 0 : i32
    return %arg0, %c0_i32 : i32, i32
  }
  func.func @transform_7(%arg0: i32) -> (i32, i32) {
    %c0_i32 = arith.constant 0 : i32
    %c0_i32_0 = arith.constant 0 : i32
    return %arg0, %c0_i32 : i32, i32
  }
}

</mosaic_0001>

<llo_original>
// kernel: tpu_custom_call.1
$region0: #{tpu_custom_call.1}
  #allocation0 [shape = 'u32[]', space=smem, size = 0x4, offset = 0x4, fixed_abs, tag = 'smem constant byte address 0x4 - core index']
  #allocation1 [shape = 'u32[144,128]{1,0:T(1,128)}', space=vmem, size = 0x12000, scoped, tag = 'internal scratch']
  %s0 = inlined_call_operand.hbm [shape: f32[32,32], index: 0, kind: input, shape index: {}]
  %s1 = inlined_call_operand.hbm [shape: f32[32,32], index: 1, kind: input, shape index: {}]
  %s2 = inlined_call_operand.vmem [shape: f32[1,32], index: 2, kind: input, shape index: {}]
  %s3 = inlined_call_operand.vmem [shape: f32[1,32], index: 3, kind: input, shape index: {}]
  %s4 = inlined_call_operand.hbm [shape: bf16[32,96], index: 4, kind: input, shape index: {}]
  %s5 = inlined_call_operand.vmem [shape: f32[1,96], index: 5, kind: input, shape index: {}]
  %s6 = inlined_call_operand.hbm [shape: f32[32,32], index: 6, kind: output, shape index: {0}]
  %s7 = inlined_call_operand.hbm [shape: bf16[32,96], index: 7, kind: output, shape index: {1}]
  %8 = xla_tuple %s6, %s7
  %s9 = sld [smem:[#allocation0]]
  $region77: #{tpu_custom_call.1} parent=0
    _
  %s11 = ssub.s32 1, %s9
  %s12 = scalar_select 0, %s11, %s9
  $region1: #{tpu_custom_call.1} parent=0
    #allocation2 [shape = 'u8[16384]{0}', space=vmem, size = 0x4000, scoped, tag = 'input window, operand 0']
    #allocation3 [shape = 's32[2]{0}', space=sflag, size = 0x8, scoped, tag = 'scoped memory for tpu_custom_call.1']
    #allocation4 [shape = 's32[2]{0}', space=sflag, size = 0x8, scoped, tag = 'scoped memory for tpu_custom_call.1']
    #allocation5 [shape = 'u8[16384]{0}', space=vmem, size = 0x4000, scoped, tag = 'input window, operand 1']
    #allocation6 [shape = 's32[2]{0}', space=sflag, size = 0x8, scoped, tag = 'scoped memory for tpu_custom_call.1']
    #allocation7 [shape = 'u8[8192]{0}', space=vmem, size = 0x2000, scoped, tag = 'input window, operand 4, single buffered']
    #allocation8 [shape = 'u8[16384]{0}', space=vmem, size = 0x4000, scoped, tag = 'output window, operand 0']
    #allocation9 [shape = 'u8[8192]{0}', space=vmem, size = 0x2000, scoped, tag = 'output window, operand 1']
    #allocation10 [shape = 's32[2]{0}', space=sflag, size = 0x8, scoped, tag = 'scoped memory for tpu_custom_call.1']
    %13 = vsyncpa [#allocation3], 0
    %s14 = scalar_lea.sflag [#allocation3], 1
    %15 = vsyncpa %s14, 0
    %16 = vsyncpa [#allocation6], 0
    %s17 = scalar_lea.sflag [#allocation6], 1
    %18 = vsyncpa %s17, 0
    %19 = vsyncpa [#allocation4], 0
    %s20 = scalar_lea.sflag [#allocation4], 1
    %21 = vsyncpa %s20, 0
    %22 = vsyncpa [#allocation10], 0
    %s23 = scalar_lea.sflag [#allocation10], 1
    %24 = vsyncpa %s23, 0
    loop: start=0, step=1, limit=4
    $region2: #{tpu_custom_call.1} parent=1 // loop_pre_header
      _
    $region3: #{tpu_custom_call.1} parent=1 // loop_header
      %s26 = sphi 0, %s30
      %p27 = scmp.ge.s32.totalorder %s26, 4
      %s36 = sphi 0, %s38
      %s39 = sphi 0, %s36
      %s40 = sphi 0, %s39
      %s56 = sphi 0, %s40
      %s62 = sphi 0, %s64
      %s65 = sphi 0, %s62
      %s66 = sphi 0, %s65
      %s82 = sphi 0, %s66
      %s86 = sphi 0, %s86
      %s88 = sphi 0, %s86
      %s89 = sphi 0, %s88
      %s103 = sphi 0, %s89
      %s107 = sphi 0, %s107
      %s109 = sphi 0, %s107
      %s110 = sphi 0, %s109
      %s124 = sphi 0, %s110
      %s128 = sphi 0, %s128
      %s130 = sphi 0, %s128
      %s131 = sphi 0, %s130
      %s145 = sphi 0, %s131
      %s149 = sphi 0, %s149
      %s151 = sphi 0, %s149
      %s152 = sphi 0, %s151
      %s166 = sphi 0, %s152
      %s172 = sphi 0, %s174
      %s175 = sphi 0, %s172
      %s176 = sphi 0, %s175
      %s192 = sphi 0, %s176
      %s198 = sphi 0, %s200
      %s201 = sphi 0, %s198
      %s202 = sphi 0, %s201
      %s218 = sphi 0, %s202
    $region4: #{tpu_custom_call.1} parent=1 // loop_header_branch
      %29 = sbr.rel (%p27) target = $region8
    $region5: #{tpu_custom_call.1} parent=1 // loop_body
      %s31 = ssub.s32 %s26, 1
      %s32 = ssub.s32 %s26, 2
      %s33 = sadd.s32 %s26, 1
      %s34 = ssub.s32 %s26, %s33
      %p35 = scmp.eq.s32.totalorder %s34, 0
      %s37 = sadd.s32 %s36, 1
      %s38 = scalar_select %p35, %s36, %s37
      %p41 = pneg %p35
      %p42 = scmp.eq.s32.totalorder %s26, 1
      %p43 = por %p41, %p42
      %p44 = scmp.ne.s32.totalorder %s36, %s39
      %p45 = scmp.eq.s32.totalorder %s26, 0
      %p46 = por %p44, %p45
      %p47 = scmp.ne.s32.totalorder %s36, %s39
      %p48 = scmp.eq.s32.totalorder %s31, 1
      %p49 = por %p47, %p48
      %p50 = scmp.ne.s32.totalorder %s39, %s40
      %p51 = scmp.eq.s32.totalorder %s31, 0
      %p52 = por %p50, %p51
      %p53 = scmp.ne.s32.totalorder %s39, %s40
      %p54 = scmp.eq.s32.totalorder %s32, 1
      %p55 = por %p53, %p54
      %p57 = scmp.ne.s32.totalorder %s40, %s56
      %p58 = scmp.eq.s32.totalorder %s32, 0
      %p59 = por %p57, %p58
      %s60 = ssub.s32 %s26, %s33
      %p61 = scmp.eq.s32.totalorder %s60, 0
      %s63 = sadd.s32 %s62, 1
      %s64 = scalar_select %p61, %s62, %s63
      %p67 = pneg %p61
      %p68 = scmp.eq.s32.totalorder %s26, 1
      %p69 = por %p67, %p68
      %p70 = scmp.ne.s32.totalorder %s62, %s65
      %p71 = scmp.eq.s32.totalorder %s26, 0
      %p72 = por %p70, %p71
      %p73 = scmp.ne.s32.totalorder %s62, %s65
      %p74 = scmp.eq.s32.totalorder %s31, 1
      %p75 = por %p73, %p74
      %p76 = scmp.ne.s32.totalorder %s65, %s66
      %p77 = scmp.eq.s32.totalorder %s31, 0
      %p78 = por %p76, %p77
      %p79 = scmp.ne.s32.totalorder %s65, %s66
      %p80 = scmp.eq.s32.totalorder %s32, 1
      %p81 = por %p79, %p80
      %p83 = scmp.ne.s32.totalorder %s66, %s82
      %p84 = scmp.eq.s32.totalorder %s32, 0
      %p85 = por %p83, %p84
      %s87 = sadd.s32 %s86, 1
      %p90 = scmp.eq.s32.totalorder %s26, 1
      %p91 = scmp.ne.s32.totalorder %s86, %s88
      %p92 = scmp.eq.s32.totalorder %s26, 0
      %p93 = por %p91, %p92
      %p94 = scmp.ne.s32.totalorder %s86, %s88
      %p95 = scmp.eq.s32.totalorder %s31, 1
      %p96 = por %p94, %p95
      %p97 = scmp.ne.s32.totalorder %s88, %s89
      %p98 = scmp.eq.s32.totalorder %s31, 0
      %p99 = por %p97, %p98
      %p100 = scmp.ne.s32.totalorder %s88, %s89
      %p101 = scmp.eq.s32.totalorder %s32, 1
      %p102 = por %p100, %p101
      %p104 = scmp.ne.s32.totalorder %s89, %s103
      %p105 = scmp.eq.s32.totalorder %s32, 0
      %p106 = por %p104, %p105
      %s108 = sadd.s32 %s107, 1
      %p111 = scmp.eq.s32.totalorder %s26, 1
      %p112 = scmp.ne.s32.totalorder %s107, %s109
      %p113 = scmp.eq.s32.totalorder %s26, 0
      %p114 = por %p112, %p113
      %p115 = scmp.ne.s32.totalorder %s107, %s109
      %p116 = scmp.eq.s32.totalorder %s31, 1
      %p117 = por %p115, %p116
      %p118 = scmp.ne.s32.totalorder %s109, %s110
      %p119 = scmp.eq.s32.totalorder %s31, 0
      %p120 = por %p118, %p119
      %p121 = scmp.ne.s32.totalorder %s109, %s110
      %p122 = scmp.eq.s32.totalorder %s32, 1
      %p123 = por %p121, %p122
      %p125 = scmp.ne.s32.totalorder %s110, %s124
      %p126 = scmp.eq.s32.totalorder %s32, 0
      %p127 = por %p125, %p126
      %s129 = sadd.s32 %s128, 1
      %p132 = scmp.eq.s32.totalorder %s26, 1
      %p133 = scmp.ne.s32.totalorder %s128, %s130
      %p134 = scmp.eq.s32.totalorder %s26, 0
      %p135 = por %p133, %p134
      %p136 = scmp.ne.s32.totalorder %s128, %s130
      %p137 = scmp.eq.s32.totalorder %s31, 1
      %p138 = por %p136, %p137
      %p139 = scmp.ne.s32.totalorder %s130, %s131
      %p140 = scmp.eq.s32.totalorder %s31, 0
      %p141 = por %p139, %p140
      %p142 = scmp.ne.s32.totalorder %s130, %s131
      %p143 = scmp.eq.s32.totalorder %s32, 1
      %p144 = por %p142, %p143
      %p146 = scmp.ne.s32.totalorder %s131, %s145
      %p147 = scmp.eq.s32.totalorder %s32, 0
      %p148 = por %p146, %p147
      %s150 = sadd.s32 %s149, 1
      %p153 = scmp.eq.s32.totalorder %s26, 1
      %p154 = scmp.ne.s32.totalorder %s149, %s151
      %p155 = scmp.eq.s32.totalorder %s26, 0
      %p156 = por %p154, %p155
      %p157 = scmp.ne.s32.totalorder %s149, %s151
      %p158 = scmp.eq.s32.totalorder %s31, 1
      %p159 = por %p157, %p158
      %p160 = scmp.ne.s32.totalorder %s151, %s152
      %p161 = scmp.eq.s32.totalorder %s31, 0
      %p162 = por %p160, %p161
      %p163 = scmp.ne.s32.totalorder %s151, %s152
      %p164 = scmp.eq.s32.totalorder %s32, 1
      %p165 = por %p163, %p164
      %p167 = scmp.ne.s32.totalorder %s152, %s166
      %p168 = scmp.eq.s32.totalorder %s32, 0
      %p169 = por %p167, %p168
      %s170 = ssub.s32 %s26, %s33
      %p171 = scmp.eq.s32.totalorder %s170, 0
      %s173 = sadd.s32 %s172, 1
      %s174 = scalar_select %p171, %s172, %s173
      %p177 = pneg %p171
      %p178 = scmp.eq.s32.totalorder %s26, 1
      %p179 = por %p177, %p178
      %p180 = scmp.ne.s32.totalorder %s172, %s175
      %p181 = scmp.eq.s32.totalorder %s26, 0
      %p182 = por %p180, %p181
      %p183 = scmp.ne.s32.totalorder %s172, %s175
      %p184 = scmp.eq.s32.totalorder %s31, 1
      %p185 = por %p183, %p184
      %p186 = scmp.ne.s32.totalorder %s175, %s176
      %p187 = scmp.eq.s32.totalorder %s31, 0
      %p188 = por %p186, %p187
      %p189 = scmp.ne.s32.totalorder %s175, %s176
      %p190 = scmp.eq.s32.totalorder %s32, 1
      %p191 = por %p189, %p190
      %p193 = scmp.ne.s32.totalorder %s176, %s192
      %p194 = scmp.eq.s32.totalorder %s32, 0
      %p195 = por %p193, %p194
      %s196 = ssub.s32 %s26, %s33
      %p197 = scmp.eq.s32.totalorder %s196, 0
      %s199 = sadd.s32 %s198, 1
      %s200 = scalar_select %p197, %s198, %s199
      %p203 = pneg %p197
      %p204 = scmp.eq.s32.totalorder %s26, 1
      %p205 = por %p203, %p204
      %p206 = scmp.ne.s32.totalorder %s198, %s201
      %p207 = scmp.eq.s32.totalorder %s26, 0
      %p208 = por %p206, %p207
      %p209 = scmp.ne.s32.totalorder %s198, %s201
      %p210 = scmp.eq.s32.totalorder %s31, 1
      %p211 = por %p209, %p210
      %p212 = scmp.ne.s32.totalorder %s201, %s202
      %p213 = scmp.eq.s32.totalorder %s31, 0
      %p214 = por %p212, %p213
      %p215 = scmp.ne.s32.totalorder %s201, %s202
      %p216 = scmp.eq.s32.totalorder %s32, 1
      %p217 = por %p215, %p216
      %p219 = scmp.ne.s32.totalorder %s202, %s218
      %p220 = scmp.eq.s32.totalorder %s32, 0
      %p221 = por %p219, %p220
      %p222 = scmp.le.s32.totalorder 1, %s26
      %p223 = scmp.lt.s32.totalorder %s26, 3
      %p224 = pnand %p222, %p223
      %p225 = pneg %p224
      // Predicated region
      $region9: #{tpu_custom_call.1} parent=5 // pred_check
        _
      $region10: #{tpu_custom_call.1} parent=5 // pred_check_branch
        %227 = sbr.rel (%p224) target = $region12
      $region11: #{tpu_custom_call.1} parent=5 // pred_region
        %s228 = ssub.s32 %s26, 1
        // Predicated region
        $region13: #{tpu_custom_call.1} parent=11 // pred_check
          %p229 = pneg %p99
        $region14: #{tpu_custom_call.1} parent=11 // pred_check_branch
          %231 = sbr.rel (%p229) target = $region16
        $region15: #{tpu_custom_call.1} parent=11 // pred_region
          _
        $region16: #{tpu_custom_call.1} parent=11 // pred_fallthru
          _
        // Predicated region
        $region17: #{tpu_custom_call.1} parent=11 // pred_check
          %p232 = pneg %p120
        $region18: #{tpu_custom_call.1} parent=11 // pred_check_branch
          %234 = sbr.rel (%p232) target = $region20
        $region19: #{tpu_custom_call.1} parent=11 // pred_region
          _
        $region20: #{tpu_custom_call.1} parent=11 // pred_fallthru
          _
        // Predicated region
        $region21: #{tpu_custom_call.1} parent=11 // pred_check
          %p235 = pneg %p141
        $region22: #{tpu_custom_call.1} parent=11 // pred_check_branch
          %237 = sbr.rel (%p235) target = $region24
        $region23: #{tpu_custom_call.1} parent=11 // pred_region
          %s239 = ssub.s32 256, 256
          %240 = vsyncadd [#allocation6], %s239
          %s241 = sshll.u32 [#allocation7], 4
          %s242 = int_to_ptr.vmem [resolvable:$true] %s241
          %247 = dma.hbm_to_vmem [thread:$0]  %s4, 256, %s242, [#allocation6], 64, 64, 4
        $region24: #{tpu_custom_call.1} parent=11 // pred_fallthru
          _
        // Predicated region
        $region25: #{tpu_custom_call.1} parent=11 // pred_check
          %p248 = pneg %p162
        $region26: #{tpu_custom_call.1} parent=11 // pred_check_branch
          %250 = sbr.rel (%p248) target = $region28
        $region27: #{tpu_custom_call.1} parent=11 // pred_region
          _
        $region28: #{tpu_custom_call.1} parent=11 // pred_fallthru
          _
      $region12: #{tpu_custom_call.1} parent=5 // pred_fallthru
        _
      %p251 = scmp.lt.s32.totalorder %s26, 2
      // Predicated region
      $region29: #{tpu_custom_call.1} parent=5 // pred_check
        %p252 = pneg %p251
      $region30: #{tpu_custom_call.1} parent=5 // pred_check_branch
        %254 = sbr.rel (%p252) target = $region32
      $region31: #{tpu_custom_call.1} parent=5 // pred_region
        // Predicated region
        $region33: #{tpu_custom_call.1} parent=31 // pred_check
          %p255 = pneg %p46
        $region34: #{tpu_custom_call.1} parent=31 // pred_check_branch
          %257 = sbr.rel (%p255) target = $region36
        $region35: #{tpu_custom_call.1} parent=31 // pred_region
          %s258 = sand.u32 %s36, 1
          %s259 = scalar_lea.sflag [#allocation3], %s258
          %s260 = sand.u32 %s36, 1
          %s261 = smul.addr %s260, 16
          %s262 = scalar_lea.vmem [#allocation2], %s261
          %s263 = smul.u32 2, %s26
          %s265 = ssub.s32 256, 256
          %266 = vsyncadd %s259, %s265
          %s267 = smul.addr %s263, 128
          %s268 = scalar_lea.hbm %s0, %s267
          %s269 = sshll.u32 %s262, 4
          %s270 = int_to_ptr.vmem [resolvable:$true] %s269
          %275 = dma.hbm_to_vmem [thread:$0]  %s268, 256, %s270, %s259, 128, 128, 8
        $region36: #{tpu_custom_call.1} parent=31 // pred_fallthru
          _
        // Predicated region
        $region37: #{tpu_custom_call.1} parent=31 // pred_check
          %p276 = pneg %p72
        $region38: #{tpu_custom_call.1} parent=31 // pred_check_branch
          %278 = sbr.rel (%p276) target = $region40
        $region39: #{tpu_custom_call.1} parent=31 // pred_region
          %s279 = sand.u32 %s26, 1
          %s280 = scalar_lea.sflag [#allocation6], %s279
          %s281 = sand.u32 %s62, 1
          %s282 = smul.addr %s281, 16
          %s283 = scalar_lea.vmem [#allocation5], %s282
          %s284 = smul.u32 2, %s26
          %s286 = ssub.s32 256, 256
          %287 = vsyncadd %s280, %s286
          %s288 = smul.addr %s284, 128
          %s289 = scalar_lea.hbm %s1, %s288
          %s290 = sshll.u32 %s283, 4
          %s291 = int_to_ptr.vmem [resolvable:$true] %s290
          %296 = dma.hbm_to_vmem [thread:$0]  %s289, 256, %s291, %s280, 128, 128, 8
        $region40: #{tpu_custom_call.1} parent=31 // pred_fallthru
          _
      $region32: #{tpu_custom_call.1} parent=5 // pred_fallthru
        _
      %p297 = scmp.le.s32.totalorder 1, %s26
      %p298 = scmp.lt.s32.totalorder %s26, 3
      %p299 = pnand %p297, %p298
      %p300 = pneg %p299
      // Predicated region
      $region41: #{tpu_custom_call.1} parent=5 // pred_check
        _
      $region42: #{tpu_custom_call.1} parent=5 // pred_check_branch
        %302 = sbr.rel (%p299) target = $region44
      $region43: #{tpu_custom_call.1} parent=5 // pred_region
        %s303 = ssub.s32 %s26, 1
        %s304 = sand.u32 %s39, 1
        %s305 = scalar_lea.sflag [#allocation3], %s304
        %s306 = sand.u32 %s39, 1
        %s307 = smul.addr %s306, 16
        %s308 = scalar_lea.vmem [#allocation2], %s307
        // Predicated region
        $region45: #{tpu_custom_call.1} parent=43 // pred_check
          %p309 = pneg %p52
        $region46: #{tpu_custom_call.1} parent=43 // pred_check_branch
          %311 = sbr.rel (%p309) target = $region48
        $region47: #{tpu_custom_call.1} parent=43 // pred_region
          %312 = dma.done %s305, 256
        $region48: #{tpu_custom_call.1} parent=43 // pred_fallthru
          _
        %s313 = sand.u32 %s31, 1
        %s314 = scalar_lea.sflag [#allocation6], %s313
        %s315 = sand.u32 %s65, 1
        %s316 = smul.addr %s315, 16
        %s317 = scalar_lea.vmem [#allocation5], %s316
        // Predicated region
        $region49: #{tpu_custom_call.1} parent=43 // pred_check
          %p318 = pneg %p78
        $region50: #{tpu_custom_call.1} parent=43 // pred_check_branch
          %320 = sbr.rel (%p318) target = $region52
        $region51: #{tpu_custom_call.1} parent=43 // pred_region
          %321 = dma.done %s314, 256
        $region52: #{tpu_custom_call.1} parent=43 // pred_fallthru
          _
        // Predicated region
        $region53: #{tpu_custom_call.1} parent=43 // pred_check
          %p322 = pneg %p141
        $region54: #{tpu_custom_call.1} parent=43 // pred_check_branch
          %324 = sbr.rel (%p322) target = $region56
        $region55: #{tpu_custom_call.1} parent=43 // pred_region
          %325 = dma.done [#allocation6], 256
        $region56: #{tpu_custom_call.1} parent=43 // pred_fallthru
          _
        %s326 = sand.u32 %s39, 1
        %s327 = scalar_lea.sflag [#allocation3], %s326
        %s328 = sand.u32 %s39, 1
        %s329 = smul.addr %s328, 16
        %s330 = scalar_lea.vmem [#allocation2], %s329
        %p331 = pneg %p52
        %p332 = pneg %p49
        %s333 = sand.u32 %s31, 1
        %s334 = scalar_lea.sflag [#allocation6], %s333
        %s335 = sand.u32 %s65, 1
        %s336 = smul.addr %s335, 16
        %s337 = scalar_lea.vmem [#allocation5], %s336
        %p338 = pneg %p78
        %p339 = pneg %p75
        %p340 = pneg %p99
        %p341 = pneg %p96
        %p342 = pneg %p120
        %p343 = pneg %p117
        %p344 = pneg %p141
        %p345 = pneg %p138
        %p346 = pneg %p162
        %p347 = pneg %p159
        %p348 = pneg %p188
        %p349 = pneg %p185
        %s350 = sand.u32 %s175, 1
        %s351 = scalar_lea.sflag [#allocation4], %s350
        %s352 = sand.u32 %s175, 1
        %s353 = smul.addr %s352, 16
        %s354 = scalar_lea.vmem [#allocation8], %s353
        %p355 = pneg %p214
        %p356 = pneg %p211
        %s357 = sand.u32 %s201, 1
        %s358 = scalar_lea.sflag [#allocation10], %s357
        %s359 = sand.u32 %s201, 1
        %s360 = smul.addr %s359, 8
        %s361 = scalar_lea.vmem [#allocation9], %s360
        %s362 = smul.u32 2, %s31
        %s363 = smul.u32 2, %s31
        %s364 = smul.u32 2, %s31
        %s365 = smul.u32 2, %s31
        %v367 = vld [vmem:[%s308] sm:$0xff]
        %v368 = vld [vmem:[%s308 + $0x8] sm:$0xff]
        %v369 = vld [vmem:[%s317] sm:$0xff]
        %v370 = vld [vmem:[%s317 + $0x8] sm:$0xff]
        %v371 = vadd.f32 %v367, %v369
        %v372 = vadd.f32 %v368, %v370
        %v373 = vld [vmem:[%s2] sm:$0x1]
        %v374 = vld [vmem:[%s3] sm:$0x1]
        %vm375 = vcmask 261120
        %v376 = vsel %vm375, %v371, 0.0
        %377 = vadd.xlane.f32.xlu0 %v376
        %v378 = vpop.xlane.xlu0 %377
        %v379 = vsel %vm375, %v372, 0.0
        %380 = vadd.xlane.f32.xlu0 %v379
        %v381 = vpop.xlane.xlu0 %380
        %v382 = vrcp.pop 32.0
        %v383 = vmul.f32 %v378, %v382
        %v384 = vmul.f32 %v381, %v382
        %v385 = vsub.f32 %v371, %v383
        %v386 = vsub.f32 %v372, %v384
        %v387 = vmul.f32 %v385, %v385
        %v388 = vmul.f32 %v386, %v386
        %v389 = vsel %vm375, %v387, 0.0
        %390 = vadd.xlane.f32.xlu0 %v389
        %v391 = vpop.xlane.xlu0 %390
        %v392 = vsel %vm375, %v388, 0.0
        %393 = vadd.xlane.f32.xlu0 %v392
        %v394 = vpop.xlane.xlu0 %393
        %v395 = vmul.f32 %v391, %v382
        %v396 = vmul.f32 %v394, %v382
        %v397 = vadd.f32 %v395, 1e-05
        %v398 = vadd.f32 %v396, 1e-05
        %v399 = vrsqrt.pop %v397
        %v400 = vrsqrt.pop %v398
        %v401 = vmul.f32 %v385, %v399
        %v402 = vmul.f32 %v386, %v400
        %v404 = vlaneseq
        %v405 = vshrl.u32 %v404, 7
        %v406 = vsub.s32 0, %v405
        %v407 = vrot.slane %v373, %v406
        %v409 = vmul.f32 %v401, %v407
        %v410 = vmul.f32 %v402, %v407
        %v412 = vlaneseq
        %v413 = vshrl.u32 %v412, 7
        %v414 = vsub.s32 0, %v413
        %v415 = vrot.slane %v374, %v414
        %v417 = vadd.f32 %v409, %v415
        %v418 = vadd.f32 %v410, %v415
        %419 = vst.msk [vmem:[%s354] sm:$0xff] %vm375, %v417
        %420 = vst.msk [vmem:[%s354 + $0x8] sm:$0xff] %vm375, %v418
        %v421 = vpack.c.bf16 %v418, %v417
        %v422 = vld [vmem:[#allocation7] sm:$0xf]
        %v423 = vld [vmem:[#allocation7 + $0x4] sm:$0xf]
        %v424 = vld [vmem:[#allocation7 + $0x8] sm:$0xf]
        %v425 = vld [vmem:[#allocation7 + $0xc] sm:$0xf]
        %v426 = vld [vmem:[%s5] sm:$0x1]
        %v428 = vlaneseq
        %v429 = vshrl.u32 %v428, 7
        %v430 = vsub.s32 0, %v429
        %v431 = vrot.slane %v426, %v430
        %v437 = vunpack.c.l.b16 %v422
        %v438 = vunpack.c.l.b16 %v423
        %v439 = vunpack.c.l.b16 %v424
        %v440 = vunpack.c.l.b16 %v425
        %v441 = vpack.c.b16 %v438, %v437
        %v442 = vpack.c.b16 %v440, %v439
        %v446 = vsel %vm375, %v421, 0
        %448 = vmatprep.subr.bf16.mxu0 0
        %449 = vmatpush1.bf16.msra.mxu0 %v441
        %450 = vmatprep.subr.bf16.mxu0 0
        %451 = vmatpush1.bf16.msra.mxu0 %v442
        %452 = vmatprep.subr.bf16.mxu0 0
        %453 = vmatpush1.bf16.msra.mxu0 0
        %454 = vmatprep.subr.bf16.mxu0 0
        %455 = vmatpush1.bf16.msra.mxu0 0
        %456 = vmatprep.subr.bf16.mxu0 0
        %457 = vmatpush1.bf16.msra.mxu0 0
        %458 = vmatprep.subr.bf16.mxu0 0
        %459 = vmatpush1.bf16.msra.mxu0 0
        %460 = vmatprep.subr.bf16.mxu0 0
        %461 = vmatpush1.bf16.msra.mxu0 0
        %462 = vmatprep.subr.bf16.mxu0 0
        %463 = vmatpush1.bf16.msra.mxu0 0
        %464 = vmatprep.subr.bf16.mxu0 0
        %465 = vmatpush1.bf16.msra.mxu0 0
        %466 = vmatprep.subr.bf16.mxu0 0
        %467 = vmatpush1.bf16.msra.mxu0 0
        %468 = vmatprep.subr.bf16.mxu0 0
        %469 = vmatpush1.bf16.msra.mxu0 0
        %470 = vmatprep.subr.bf16.mxu0 0
        %471 = vmatpush1.bf16.msra.mxu0 0
        %472 = vmatprep.subr.bf16.mxu0 0
        %473 = vmatpush1.bf16.msra.mxu0 0
        %474 = vmatprep.subr.bf16.mxu0 0
        %475 = vmatpush1.bf16.msra.mxu0 0
        %476 = vmatprep.subr.bf16.mxu0 0
        %477 = vmatpush1.bf16.msra.mxu0 0
        %478 = vmatprep.subr.bf16.mxu0 0
        %479 = vmatpush1.bf16.msra.mxu0 0
        %480 = vmatprep.mubr.bf16.mxu0 0
        %481 = vmatmul.mubr.bf16.gmra.mrb[0].mxu0 %v446
        %v482 = vpop.f32.mrb[0].mxu0
        %v483 = vadd.f32 %v431, %v482
        %v484 = vpop.f32.mrb[0].mxu0
        %v485 = vpop.f32.mrb[0].mxu0
        %v486 = vadd.f32 %v431, %v485
        %v487 = vpop.f32.mrb[0].mxu0
        %488 = vdwg.mxu0
        %v489 = vpack.c.bf16 %v486, %v483
        %v491 = vunpack.c.l.b16 %v489
        %v492 = vunpack.c.h.b16 %v489
        %v493 = vpack.c.b16 %v491, %v491
        %v494 = vpack.c.b16 %v492, %v492
        %vm497 = vcmask 781312
        %498 = vst.msk [vmem:[%s361] sm:$0xf] %vm497, %v493
        %499 = vst.msk [vmem:[%s361 + $0x4] sm:$0xf] %vm497, %v494
        %s500 = sand.u32 %s175, 1
        %s501 = scalar_lea.sflag [#allocation4], %s500
        %s502 = sand.u32 %s175, 1
        %s503 = smul.addr %s502, 16
        %s504 = scalar_lea.vmem [#allocation8], %s503
        %s505 = sand.u32 %s201, 1
        %s506 = scalar_lea.sflag [#allocation10], %s505
        %s507 = sand.u32 %s201, 1
        %s508 = smul.addr %s507, 8
        %s509 = scalar_lea.vmem [#allocation9], %s508
        // Predicated region
        $region57: #{tpu_custom_call.1} parent=43 // pred_check
          %p510 = pneg %p185
        $region58: #{tpu_custom_call.1} parent=43 // pred_check_branch
          %512 = sbr.rel (%p510) target = $region60
        $region59: #{tpu_custom_call.1} parent=43 // pred_region
          %s513 = smul.u32 2, %s31
          %s515 = ssub.s32 256, 256
          %516 = vsyncadd %s501, %s515
          %s517 = smul.addr %s513, 128
          %s518 = scalar_lea.hbm %s6, %s517
          %s519 = sshll.u32 %s504, 4
          %s520 = int_to_ptr.vmem [resolvable:$true] %s519
          %525 = dma.vmem_to_hbm [thread:$0]  %s520, 256, %s518, %s501, 128, 128, 8
        $region60: #{tpu_custom_call.1} parent=43 // pred_fallthru
          _
        // Predicated region
        $region61: #{tpu_custom_call.1} parent=43 // pred_check
          %p526 = pneg %p211
        $region62: #{tpu_custom_call.1} parent=43 // pred_check_branch
          %528 = sbr.rel (%p526) target = $region64
        $region63: #{tpu_custom_call.1} parent=43 // pred_region
          %s529 = smul.u32 2, %s31
          %s531 = ssub.s32 128, 128
          %532 = vsyncadd %s506, %s531
          %s533 = smul.addr %s529, 64
          %s534 = scalar_lea.hbm %s7, %s533
          %s535 = sshll.u32 %s509, 4
          %s536 = int_to_ptr.vmem [resolvable:$true] %s535
          %541 = dma.vmem_to_hbm [thread:$0]  %s536, 128, %s534, %s506, 64, 64, 4
        $region64: #{tpu_custom_call.1} parent=43 // pred_fallthru
          _
      $region44: #{tpu_custom_call.1} parent=5 // pred_fallthru
        _
      %p542 = scmp.le.s32.totalorder 2, %s26
      // Predicated region
      $region65: #{tpu_custom_call.1} parent=5 // pred_check
        %p543 = pneg %p542
      $region66: #{tpu_custom_call.1} parent=5 // pred_check_branch
        %545 = sbr.rel (%p543) target = $region68
      $region67: #{tpu_custom_call.1} parent=5 // pred_region
        %s546 = ssub.s32 %s26, 2
        // Predicated region
        $region69: #{tpu_custom_call.1} parent=67 // pred_check
          %p547 = pneg %p191
        $region70: #{tpu_custom_call.1} parent=67 // pred_check_branch
          %549 = sbr.rel (%p547) target = $region72
        $region71: #{tpu_custom_call.1} parent=67 // pred_region
          %s550 = sand.u32 %s176, 1
          %s551 = scalar_lea.sflag [#allocation4], %s550
          %s552 = sand.u32 %s176, 1
          %s553 = smul.addr %s552, 16
          %s554 = scalar_lea.vmem [#allocation8], %s553
          %555 = dma.done %s551, 256
        $region72: #{tpu_custom_call.1} parent=67 // pred_fallthru
          _
        // Predicated region
        $region73: #{tpu_custom_call.1} parent=67 // pred_check
          %p556 = pneg %p217
        $region74: #{tpu_custom_call.1} parent=67 // pred_check_branch
          %558 = sbr.rel (%p556) target = $region76
        $region75: #{tpu_custom_call.1} parent=67 // pred_region
          %s559 = sand.u32 %s202, 1
          %s560 = scalar_lea.sflag [#allocation10], %s559
          %s561 = sand.u32 %s202, 1
          %s562 = smul.addr %s561, 8
          %s563 = scalar_lea.vmem [#allocation9], %s562
          %564 = dma.done %s560, 128
        $region76: #{tpu_custom_call.1} parent=67 // pred_fallthru
          _
      $region68: #{tpu_custom_call.1} parent=5 // pred_fallthru
        _
    $region6: #{tpu_custom_call.1} parent=1 // loop_footer
      %s30 = sadd.s32 1, %s26
    $region7: #{tpu_custom_call.1} parent=1 // loop_footer_branch
      %25 = sbr.rel target = $region3
    $region8: #{tpu_custom_call.1} parent=1 // loop_exit
      _
    %565 = vsyncpa [#allocation3], 1
    %s566 = scalar_lea.sflag [#allocation3], 1
    %567 = vsyncpa %s566, 1
    %568 = vsyncpa [#allocation6], 1
    %s569 = scalar_lea.sflag [#allocation6], 1
    %570 = vsyncpa %s569, 1
    %571 = vsyncpa [#allocation4], 1
    %s572 = scalar_lea.sflag [#allocation4], 1
    %573 = vsyncpa %s572, 1
    %574 = vsyncpa [#allocation10], 1
    %s575 = scalar_lea.sflag [#allocation10], 1
    %576 = vsyncpa %s575, 1

</llo_original>
